<compile_context>
chip_gen: v7x
topology: tpu7x:2x2x1
jax: 0.10.0
libtpu: 0.0.40
codegen_flags: <defaults>
</compile_context>

<pallas_src>
import jax
import jax.numpy as jnp
from jax.experimental import pallas as pl
from jax.experimental.pallas import tpu as pltpu


def visinet_kernel(x_ref, y_ref, w1_ref, b1_ref, w2_ref, b2_ref, oxy_ref):
    """mean(.,1) [folded into W1] -> Linear -> ReLU -> Linear, x & y fused."""
    tb = x_ref.shape[0]

    # One LHS of 2*tb rows instead of two tb-row matmuls (shared weights).
    xy = jnp.concatenate([x_ref[...], y_ref[...]], axis=0)          # (2tb, S*D)

    # First layer: mean + 1/S already folded into w1_ref; accumulate in f32.
    h = jnp.dot(xy, w1_ref[...], preferred_element_type=jnp.float32)
    h = jnp.maximum(h + b1_ref[...], 0.0)                           # (2tb, H) f32

    # Second layer (cast activations to the weight dtype for the MXU push;
    # no-op in the f32 path).
    o = jnp.dot(h.astype(w2_ref.dtype), w2_ref[...],
                preferred_element_type=jnp.float32) + b2_ref[...]   # (2tb, O)

    # Pack [ox | oy] into one lane-denser (tb, 2*O) store.
    oxy_ref[...] = jnp.concatenate([o[:tb], o[tb:]], axis=1).astype(oxy_ref.dtype)


def _pick_batch_tile(B, row_bytes):
    """Largest multiple-of-8 divisor of B giving >=4 grid steps and <=4MiB blocks."""
    divs = [d for d in range(8, B + 1, 8) if B % d == 0]
    if not divs:
        return B
    good = [d for d in divs if (B // d) >= 4 and d * row_bytes <= 4 * 1024 * 1024]
    if good:
        return max(good)
    small = [d for d in divs if d * row_bytes <= 4 * 1024 * 1024]
    return max(small) if small else min(divs)


def visinet_forward(x, y, w1, b1, w2, b2, *, batch_tile=None, compute_dtype=None):
    """x, y: (B, S, D).  w1: (D, H), b1: (H,), w2: (H, O), b2: (O,).

    Weights are stored (in_features, out_features), i.e. transposed vs
    torch.nn.Linear.weight. Returns (latent_x, latent_y), each (B, O).
    """
    B, S, D = x.shape
    H = w1.shape[1]
    O = w2.shape[1]
    SD = S * D
    out_dtype = x.dtype

    # Lane-dense inputs: (B, S*D). Fold mean-over-S (and its 1/S) into W1.
    xf = x.reshape(B, SD)
    yf = y.reshape(B, SD)
    w1_eff = jnp.tile(w1 * (1.0 / S), (S, 1))            # (S*D, H)
    b1_2d = b1.reshape(1, H).astype(jnp.float32)
    b2_2d = b2.reshape(1, O).astype(jnp.float32)

    if compute_dtype is not None:
        xf = xf.astype(compute_dtype)
        yf = yf.astype(compute_dtype)
        w1_eff = w1_eff.astype(compute_dtype)
        w2 = w2.astype(compute_dtype)

    in_itemsize = jnp.dtype(xf.dtype).itemsize
    w_itemsize = jnp.dtype(w1_eff.dtype).itemsize

    tb = _pick_batch_tile(B, SD * in_itemsize) if batch_tile is None else batch_tile
    assert B % tb == 0, f"batch_tile {tb} must divide batch {B}"
    grid = (B // tb,)

    # VMEM footprint (double-buffered inputs/outputs + resident weights),
    # with generous headroom; stays well under v7x's 64 MiB physical VMEM.
    vmem_needed = (
        2 * 2 * tb * SD * in_itemsize
        + 2 * (SD * H + H) * w_itemsize
        + 2 * (H * O + O) * w_itemsize
        + 2 * tb * 2 * O * 4
    )
    vmem_limit = int(min(max(4 * vmem_needed, 16 * 2**20), 48 * 2**20))

    cost = pl.CostEstimate(
        flops=2 * (2 * B) * SD * H + 2 * (2 * B) * H * O,
        transcendentals=0,
        bytes_accessed=(2 * B * SD * in_itemsize
                        + (SD * H + H * O) * w_itemsize
                        + (H + O) * 4
                        + B * 2 * O * jnp.dtype(out_dtype).itemsize),
    )

    in_specs = [
        pl.BlockSpec((tb, SD), lambda i: (i, 0)),        # x tile (lane-dense)
        pl.BlockSpec((tb, SD), lambda i: (i, 0)),        # y tile
        pl.BlockSpec((SD, H), lambda i: (0, 0)),         # W1_eff (VMEM resident)
        pl.BlockSpec((1, H), lambda i: (0, 0)),          # b1
        pl.BlockSpec((H, O), lambda i: (0, 0)),          # W2
        pl.BlockSpec((1, O), lambda i: (0, 0)),          # b2
    ]
    out_specs = pl.BlockSpec((tb, 2 * O), lambda i: (i, 0))
    out_shape = jax.ShapeDtypeStruct((B, 2 * O), out_dtype)

    oxy = pl.pallas_call(
        visinet_kernel,
        out_shape=out_shape,
        grid_spec=pltpu.PrefetchScalarGridSpec(
            num_scalar_prefetch=0,
            grid=grid,
            in_specs=in_specs,
            out_specs=out_specs,
        ),
        compiler_params=pltpu.CompilerParams(
            dimension_semantics=("parallel",),   # batch axis: pipelined + megacore
            vmem_limit_bytes=vmem_limit,
        ),
        cost_estimate=cost,
    )(xf, yf, w1_eff, b1_2d, w2, b2_2d)

    return oxy[:, :O], oxy[:, O:]


def reference_forward(x, y, w1, b1, w2, b2):
    def head(v):
        m = jnp.mean(v, axis=1)
        h = jnp.maximum(m @ w1 + b1, 0.0)
        return h @ w2 + b2
    return head(x), head(y)


if __name__ == "__main__":
    # Small shapes consistent with the forward (seq of embeddings per sample):
    # batch=64, seq_len=8, embedding_dimension=32, hidden=32, latent_out=16.
    # Default tiling picks tb=16 -> grid=(4,), so the pipeline engages.
    B, S, D, H, O = 64, 8, 32, 32, 16

    key = jax.random.PRNGKey(0)
    kx, ky, kw1, kb1, kw2, kb2 = jax.random.split(key, 6)

    x = jax.random.normal(kx, (B, S, D), dtype=jnp.float32)
    y = jax.random.normal(ky, (B, S, D), dtype=jnp.float32)

    # Deterministic synthetic parameters (not a checkpoint).
    w1 = jax.random.normal(kw1, (D, H), dtype=jnp.float32) * (1.0 / jnp.sqrt(D))
    b1 = jax.random.normal(kb1, (H,), dtype=jnp.float32) * 0.01
    w2 = jax.random.normal(kw2, (H, O), dtype=jnp.float32) * (1.0 / jnp.sqrt(H))
    b2 = jax.random.normal(kb2, (O,), dtype=jnp.float32) * 0.01

    rx, ry = reference_forward(x, y, w1, b1, w2, b2)

    # f32 path (exact check against the reference).
    lx, ly = visinet_forward(x, y, w1, b1, w2, b2)
    jax.block_until_ready((lx, ly))
    assert lx.shape == (B, O) and ly.shape == (B, O)
    assert jnp.allclose(lx, rx, atol=1e-4, rtol=1e-4)
    assert jnp.allclose(ly, ry, atol=1e-4, rtol=1e-4)

    # bf16-input path (halves HBM read traffic; f32 accumulation) — loose check.
    lx16, ly16 = visinet_forward(x, y, w1, b1, w2, b2, compute_dtype=jnp.bfloat16)
    jax.block_until_ready((lx16, ly16))
    assert jnp.allclose(lx16, rx, atol=5e-2, rtol=5e-2)
    assert jnp.allclose(ly16, ry, atol=5e-2, rtol=5e-2)

    print("KERNEL_OK")
</pallas_src>

<mosaic_0001>
module attributes {stable_mosaic.version = 11 : i64} {
  func.func @visinet_kernel(%arg0: i32, %arg1: memref<16x256xf32, #tpu.memory_space<vmem>>, %arg2: memref<16x256xf32, #tpu.memory_space<vmem>>, %arg3: memref<256x32xf32, #tpu.memory_space<vmem>>, %arg4: memref<1x32xf32, #tpu.memory_space<vmem>>, %arg5: memref<32x16xf32, #tpu.memory_space<vmem>>, %arg6: memref<1x16xf32, #tpu.memory_space<vmem>>, %arg7: memref<16x32xf32, #tpu.memory_space<vmem>>) attributes {dimension_semantics = [#tpu.dimension_semantics<parallel>], iteration_bounds = array<i64: 4>, scalar_prefetch = 0 : i64, scratch_operands = 0 : i64, tpu.core_type = #tpu.core_type<tc>, window_params = [{transform_indices = @transform_0, window_bounds = array<i64: 16, 256>}, {transform_indices = @transform_1, window_bounds = array<i64: 16, 256>}, {pipeline_mode = #tpu.pipeline_mode<synchronous>, transform_indices = @transform_2, window_bounds = array<i64: 256, 32>}, {pipeline_mode = #tpu.pipeline_mode<synchronous>, transform_indices = @transform_3, window_bounds = array<i64: 1, 32>}, {pipeline_mode = #tpu.pipeline_mode<synchronous>, transform_indices = @transform_4, window_bounds = array<i64: 32, 16>}, {pipeline_mode = #tpu.pipeline_mode<synchronous>, transform_indices = @transform_5, window_bounds = array<i64: 1, 16>}, {transform_indices = @transform_6, window_bounds = array<i64: 16, 32>}]} {
    %c0 = arith.constant 0 : index
    %c0_0 = arith.constant 0 : index
    %0 = vector.load %arg1[%c0, %c0_0] : memref<16x256xf32, #tpu.memory_space<vmem>>, vector<16x256xf32>
    %c0_1 = arith.constant 0 : index
    %c0_2 = arith.constant 0 : index
    %1 = vector.load %arg2[%c0_1, %c0_2] : memref<16x256xf32, #tpu.memory_space<vmem>>, vector<16x256xf32>
    %2 = tpu.concatenate %0, %1 in 0 : vector<16x256xf32>, vector<16x256xf32> -> vector<32x256xf32>
    %c0_3 = arith.constant 0 : index
    %c0_4 = arith.constant 0 : index
    %3 = vector.load %arg3[%c0_3, %c0_4] : memref<256x32xf32, #tpu.memory_space<vmem>>, vector<256x32xf32>
    %cst = arith.constant dense<0.000000e+00> : vector<32x32xf32>
    %4 = tpu.matmul %2, %3, %cst {dimension_numbers = #tpu.dot_dimension_numbers<[1], [0], [0], [1], [0, 0, 1, 1], [], []>} : vector<32x256xf32>, vector<256x32xf32>, vector<32x32xf32> -> vector<32x32xf32>
    %c0_5 = arith.constant 0 : index
    %c0_6 = arith.constant 0 : index
    %5 = vector.load %arg4[%c0_5, %c0_6] : memref<1x32xf32, #tpu.memory_space<vmem>>, vector<1x32xf32>
    %6 = vector.broadcast %5 : vector<1x32xf32> to vector<32x32xf32>
    %7 = arith.addf %4, %6 : vector<32x32xf32>
    %cst_7 = arith.constant 0.000000e+00 : f32
    %8 = vector.broadcast %cst_7 : f32 to vector<32x32xf32>
    %9 = arith.maximumf %7, %8 : vector<32x32xf32>
    %c0_8 = arith.constant 0 : index
    %c0_9 = arith.constant 0 : index
    %10 = vector.load %arg5[%c0_8, %c0_9] : memref<32x16xf32, #tpu.memory_space<vmem>>, vector<32x16xf32>
    %cst_10 = arith.constant dense<0.000000e+00> : vector<32x16xf32>
    %11 = tpu.matmul %9, %10, %cst_10 {dimension_numbers = #tpu.dot_dimension_numbers<[1], [0], [0], [1], [0, 0, 1, 1], [], []>} : vector<32x32xf32>, vector<32x16xf32>, vector<32x16xf32> -> vector<32x16xf32>
    %c0_11 = arith.constant 0 : index
    %c0_12 = arith.constant 0 : index
    %12 = vector.load %arg6[%c0_11, %c0_12] : memref<1x16xf32, #tpu.memory_space<vmem>>, vector<1x16xf32>
    %13 = vector.broadcast %12 : vector<1x16xf32> to vector<32x16xf32>
    %14 = arith.addf %11, %13 : vector<32x16xf32>
    %15 = vector.extract_strided_slice %14 {offsets = [0, 0], sizes = [16, 16], strides = [1, 1]} : vector<32x16xf32> to vector<16x16xf32>
    %16 = vector.extract_strided_slice %14 {offsets = [16, 0], sizes = [16, 16], strides = [1, 1]} : vector<32x16xf32> to vector<16x16xf32>
    %17 = tpu.concatenate %15, %16 in 1 : vector<16x16xf32>, vector<16x16xf32> -> vector<16x32xf32>
    %c0_13 = arith.constant 0 : index
    %c0_14 = arith.constant 0 : index
    %18 = vector.load %arg7[%c0_13, %c0_14] : memref<16x32xf32, #tpu.memory_space<vmem>>, vector<16x32xf32>
    tpu.vector_store %arg7[%c0_13, %c0_14], %17 {strides = array<i32>} : memref<16x32xf32, #tpu.memory_space<vmem>>, vector<16x32xf32>,
    return
  }
  func.func @transform_0(%arg0: i32) -> (i32, i32) {
    %c0_i32 = arith.constant 0 : i32
    %c0_i32_0 = arith.constant 0 : i32
    return %arg0, %c0_i32 : i32, i32
  }
  func.func @transform_1(%arg0: i32) -> (i32, i32) {
    %c0_i32 = arith.constant 0 : i32
    %c0_i32_0 = arith.constant 0 : i32
    return %arg0, %c0_i32 : i32, i32
  }
  func.func @transform_2(%arg0: i32) -> (i32, i32) {
    %c0_i32 = arith.constant 0 : i32
    %c0_i32_0 = arith.constant 0 : i32
    %c0_i32_1 = arith.constant 0 : i32
    return %c0_i32, %c0_i32_0 : i32, i32
  }
  func.func @transform_3(%arg0: i32) -> (i32, i32) {
    %c0_i32 = arith.constant 0 : i32
    %c0_i32_0 = arith.constant 0 : i32
    %c0_i32_1 = arith.constant 0 : i32
    return %c0_i32, %c0_i32_0 : i32, i32
  }
  func.func @transform_4(%arg0: i32) -> (i32, i32) {
    %c0_i32 = arith.constant 0 : i32
    %c0_i32_0 = arith.constant 0 : i32
    %c0_i32_1 = arith.constant 0 : i32
    return %c0_i32, %c0_i32_0 : i32, i32
  }
  func.func @transform_5(%arg0: i32) -> (i32, i32) {
    %c0_i32 = arith.constant 0 : i32
    %c0_i32_0 = arith.constant 0 : i32
    %c0_i32_1 = arith.constant 0 : i32
    return %c0_i32, %c0_i32_0 : i32, i32
  }
  func.func @transform_6(%arg0: i32) -> (i32, i32) {
    %c0_i32 = arith.constant 0 : i32
    %c0_i32_0 = arith.constant 0 : i32
    return %arg0, %c0_i32 : i32, i32
  }
}

</mosaic_0001>

<llo_original>
// kernel: tpu_custom_call.1
$region0: #{tpu_custom_call.1}
  #allocation0 [shape = 'u32[]', space=smem, size = 0x4, offset = 0x4, fixed_abs, tag = 'smem constant byte address 0x4 - core index']
  #allocation1 [shape = 'u32[144,128]{1,0:T(1,128)}', space=vmem, size = 0x12000, scoped, tag = 'internal scratch']
  %s0 = inlined_call_operand.vmem [shape: f32[64,256], index: 0, kind: input, shape index: {}]
  %s1 = inlined_call_operand.vmem [shape: f32[64,256], index: 1, kind: input, shape index: {}]
  %s2 = inlined_call_operand.vmem [shape: f32[256,32], index: 2, kind: input, shape index: {}]
  %s3 = inlined_call_operand.vmem [shape: f32[1,32], index: 3, kind: input, shape index: {}]
  %s4 = inlined_call_operand.vmem [shape: f32[32,16], index: 4, kind: input, shape index: {}]
  %s5 = inlined_call_operand.vmem [shape: f32[1,16], index: 5, kind: input, shape index: {}]
  %s6 = inlined_call_operand.vmem [shape: f32[64,32], index: 6, kind: output, shape index: {}]
  %s7 = sld [smem:[#allocation0]]
  $region57: #{tpu_custom_call.1} parent=0
    _
  %s9 = ssub.s32 1, %s7
  %s10 = scalar_select 0, %s9, %s7
  loop: start=0, step=1, limit=6
  $region2: #{tpu_custom_call.1} parent=0 // loop_pre_header
    _
  $region3: #{tpu_custom_call.1} parent=0 // loop_header
    %s12 = sphi 0, %s16
    %p13 = scmp.ge.s32.totalorder %s12, 6
    %s22 = sphi 0, %s24
    %s25 = sphi 0, %s22
    %s26 = sphi 0, %s25
    %s42 = sphi 0, %s26
    %s48 = sphi 0, %s50
    %s51 = sphi 0, %s48
    %s52 = sphi 0, %s51
    %s68 = sphi 0, %s52
    %s72 = sphi 0, %s72
    %s74 = sphi 0, %s72
    %s75 = sphi 0, %s74
    %s89 = sphi 0, %s75
    %s93 = sphi 0, %s93
    %s95 = sphi 0, %s93
    %s96 = sphi 0, %s95
    %s110 = sphi 0, %s96
    %s114 = sphi 0, %s114
    %s116 = sphi 0, %s114
    %s117 = sphi 0, %s116
    %s131 = sphi 0, %s117
    %s135 = sphi 0, %s135
    %s137 = sphi 0, %s135
    %s138 = sphi 0, %s137
    %s152 = sphi 0, %s138
    %s158 = sphi 0, %s160
    %s161 = sphi 0, %s158
    %s162 = sphi 0, %s161
    %s178 = sphi 0, %s162
  $region4: #{tpu_custom_call.1} parent=0 // loop_header_branch
    %15 = sbr.rel (%p13) target = $region8
  $region5: #{tpu_custom_call.1} parent=0 // loop_body
    %s17 = ssub.s32 %s12, 1
    %s18 = ssub.s32 %s12, 2
    %s19 = sadd.s32 %s12, 1
    %s20 = ssub.s32 %s12, %s19
    %p21 = scmp.eq.s32.totalorder %s20, 0
    %s23 = sadd.s32 %s22, 1
    %s24 = scalar_select %p21, %s22, %s23
    %p27 = pneg %p21
    %p28 = scmp.eq.s32.totalorder %s12, 3
    %p29 = por %p27, %p28
    %p30 = scmp.ne.s32.totalorder %s22, %s25
    %p31 = scmp.eq.s32.totalorder %s12, 0
    %p32 = por %p30, %p31
    %p33 = scmp.ne.s32.totalorder %s22, %s25
    %p34 = scmp.eq.s32.totalorder %s17, 3
    %p35 = por %p33, %p34
    %p36 = scmp.ne.s32.totalorder %s25, %s26
    %p37 = scmp.eq.s32.totalorder %s17, 0
    %p38 = por %p36, %p37
    %p39 = scmp.ne.s32.totalorder %s25, %s26
    %p40 = scmp.eq.s32.totalorder %s18, 3
    %p41 = por %p39, %p40
    %p43 = scmp.ne.s32.totalorder %s26, %s42
    %p44 = scmp.eq.s32.totalorder %s18, 0
    %p45 = por %p43, %p44
    %s46 = ssub.s32 %s12, %s19
    %p47 = scmp.eq.s32.totalorder %s46, 0
    %s49 = sadd.s32 %s48, 1
    %s50 = scalar_select %p47, %s48, %s49
    %p53 = pneg %p47
    %p54 = scmp.eq.s32.totalorder %s12, 3
    %p55 = por %p53, %p54
    %p56 = scmp.ne.s32.totalorder %s48, %s51
    %p57 = scmp.eq.s32.totalorder %s12, 0
    %p58 = por %p56, %p57
    %p59 = scmp.ne.s32.totalorder %s48, %s51
    %p60 = scmp.eq.s32.totalorder %s17, 3
    %p61 = por %p59, %p60
    %p62 = scmp.ne.s32.totalorder %s51, %s52
    %p63 = scmp.eq.s32.totalorder %s17, 0
    %p64 = por %p62, %p63
    %p65 = scmp.ne.s32.totalorder %s51, %s52
    %p66 = scmp.eq.s32.totalorder %s18, 3
    %p67 = por %p65, %p66
    %p69 = scmp.ne.s32.totalorder %s52, %s68
    %p70 = scmp.eq.s32.totalorder %s18, 0
    %p71 = por %p69, %p70
    %s73 = sadd.s32 %s72, 1
    %p76 = scmp.eq.s32.totalorder %s12, 3
    %p77 = scmp.ne.s32.totalorder %s72, %s74
    %p78 = scmp.eq.s32.totalorder %s12, 0
    %p79 = por %p77, %p78
    %p80 = scmp.ne.s32.totalorder %s72, %s74
    %p81 = scmp.eq.s32.totalorder %s17, 3
    %p82 = por %p80, %p81
    %p83 = scmp.ne.s32.totalorder %s74, %s75
    %p84 = scmp.eq.s32.totalorder %s17, 0
    %p85 = por %p83, %p84
    %p86 = scmp.ne.s32.totalorder %s74, %s75
    %p87 = scmp.eq.s32.totalorder %s18, 3
    %p88 = por %p86, %p87
    %p90 = scmp.ne.s32.totalorder %s75, %s89
    %p91 = scmp.eq.s32.totalorder %s18, 0
    %p92 = por %p90, %p91
    %s94 = sadd.s32 %s93, 1
    %p97 = scmp.eq.s32.totalorder %s12, 3
    %p98 = scmp.ne.s32.totalorder %s93, %s95
    %p99 = scmp.eq.s32.totalorder %s12, 0
    %p100 = por %p98, %p99
    %p101 = scmp.ne.s32.totalorder %s93, %s95
    %p102 = scmp.eq.s32.totalorder %s17, 3
    %p103 = por %p101, %p102
    %p104 = scmp.ne.s32.totalorder %s95, %s96
    %p105 = scmp.eq.s32.totalorder %s17, 0
    %p106 = por %p104, %p105
    %p107 = scmp.ne.s32.totalorder %s95, %s96
    %p108 = scmp.eq.s32.totalorder %s18, 3
    %p109 = por %p107, %p108
    %p111 = scmp.ne.s32.totalorder %s96, %s110
    %p112 = scmp.eq.s32.totalorder %s18, 0
    %p113 = por %p111, %p112
    %s115 = sadd.s32 %s114, 1
    %p118 = scmp.eq.s32.totalorder %s12, 3
    %p119 = scmp.ne.s32.totalorder %s114, %s116
    %p120 = scmp.eq.s32.totalorder %s12, 0
    %p121 = por %p119, %p120
    %p122 = scmp.ne.s32.totalorder %s114, %s116
    %p123 = scmp.eq.s32.totalorder %s17, 3
    %p124 = por %p122, %p123
    %p125 = scmp.ne.s32.totalorder %s116, %s117
    %p126 = scmp.eq.s32.totalorder %s17, 0
    %p127 = por %p125, %p126
    %p128 = scmp.ne.s32.totalorder %s116, %s117
    %p129 = scmp.eq.s32.totalorder %s18, 3
    %p130 = por %p128, %p129
    %p132 = scmp.ne.s32.totalorder %s117, %s131
    %p133 = scmp.eq.s32.totalorder %s18, 0
    %p134 = por %p132, %p133
    %s136 = sadd.s32 %s135, 1
    %p139 = scmp.eq.s32.totalorder %s12, 3
    %p140 = scmp.ne.s32.totalorder %s135, %s137
    %p141 = scmp.eq.s32.totalorder %s12, 0
    %p142 = por %p140, %p141
    %p143 = scmp.ne.s32.totalorder %s135, %s137
    %p144 = scmp.eq.s32.totalorder %s17, 3
    %p145 = por %p143, %p144
    %p146 = scmp.ne.s32.totalorder %s137, %s138
    %p147 = scmp.eq.s32.totalorder %s17, 0
    %p148 = por %p146, %p147
    %p149 = scmp.ne.s32.totalorder %s137, %s138
    %p150 = scmp.eq.s32.totalorder %s18, 3
    %p151 = por %p149, %p150
    %p153 = scmp.ne.s32.totalorder %s138, %s152
    %p154 = scmp.eq.s32.totalorder %s18, 0
    %p155 = por %p153, %p154
    %s156 = ssub.s32 %s12, %s19
    %p157 = scmp.eq.s32.totalorder %s156, 0
    %s159 = sadd.s32 %s158, 1
    %s160 = scalar_select %p157, %s158, %s159
    %p163 = pneg %p157
    %p164 = scmp.eq.s32.totalorder %s12, 3
    %p165 = por %p163, %p164
    %p166 = scmp.ne.s32.totalorder %s158, %s161
    %p167 = scmp.eq.s32.totalorder %s12, 0
    %p168 = por %p166, %p167
    %p169 = scmp.ne.s32.totalorder %s158, %s161
    %p170 = scmp.eq.s32.totalorder %s17, 3
    %p171 = por %p169, %p170
    %p172 = scmp.ne.s32.totalorder %s161, %s162
    %p173 = scmp.eq.s32.totalorder %s17, 0
    %p174 = por %p172, %p173
    %p175 = scmp.ne.s32.totalorder %s161, %s162
    %p176 = scmp.eq.s32.totalorder %s18, 3
    %p177 = por %p175, %p176
    %p179 = scmp.ne.s32.totalorder %s162, %s178
    %p180 = scmp.eq.s32.totalorder %s18, 0
    %p181 = por %p179, %p180
    %p182 = scmp.le.s32.totalorder 1, %s12
    %p183 = scmp.lt.s32.totalorder %s12, 5
    %p184 = pnand %p182, %p183
    %p185 = pneg %p184
    // Predicated region
    $region9: #{tpu_custom_call.1} parent=5 // pred_check
      _
    $region10: #{tpu_custom_call.1} parent=5 // pred_check_branch
      %187 = sbr.rel (%p184) target = $region12
    $region11: #{tpu_custom_call.1} parent=5 // pred_region
      %s188 = ssub.s32 %s12, 1
      // Predicated region
      $region13: #{tpu_custom_call.1} parent=11 // pred_check
        %p189 = pneg %p85
      $region14: #{tpu_custom_call.1} parent=11 // pred_check_branch
        %191 = sbr.rel (%p189) target = $region16
      $region15: #{tpu_custom_call.1} parent=11 // pred_region
        _
      $region16: #{tpu_custom_call.1} parent=11 // pred_fallthru
        _
      // Predicated region
      $region17: #{tpu_custom_call.1} parent=11 // pred_check
        %p192 = pneg %p106
      $region18: #{tpu_custom_call.1} parent=11 // pred_check_branch
        %194 = sbr.rel (%p192) target = $region20
      $region19: #{tpu_custom_call.1} parent=11 // pred_region
        _
      $region20: #{tpu_custom_call.1} parent=11 // pred_fallthru
        _
      // Predicated region
      $region21: #{tpu_custom_call.1} parent=11 // pred_check
        %p195 = pneg %p127
      $region22: #{tpu_custom_call.1} parent=11 // pred_check_branch
        %197 = sbr.rel (%p195) target = $region24
      $region23: #{tpu_custom_call.1} parent=11 // pred_region
        _
      $region24: #{tpu_custom_call.1} parent=11 // pred_fallthru
        _
      // Predicated region
      $region25: #{tpu_custom_call.1} parent=11 // pred_check
        %p198 = pneg %p148
      $region26: #{tpu_custom_call.1} parent=11 // pred_check_branch
        %200 = sbr.rel (%p198) target = $region28
      $region27: #{tpu_custom_call.1} parent=11 // pred_region
        _
      $region28: #{tpu_custom_call.1} parent=11 // pred_fallthru
        _
    $region12: #{tpu_custom_call.1} parent=5 // pred_fallthru
      _
    %p201 = scmp.lt.s32.totalorder %s12, 4
    // Predicated region
    $region29: #{tpu_custom_call.1} parent=5 // pred_check
      %p202 = pneg %p201
    $region30: #{tpu_custom_call.1} parent=5 // pred_check_branch
      %204 = sbr.rel (%p202) target = $region32
    $region31: #{tpu_custom_call.1} parent=5 // pred_region
      // Predicated region
      $region33: #{tpu_custom_call.1} parent=31 // pred_check
        %p205 = pneg %p32
      $region34: #{tpu_custom_call.1} parent=31 // pred_check_branch
        %207 = sbr.rel (%p205) target = $region36
      $region35: #{tpu_custom_call.1} parent=31 // pred_region
        %s208 = smul.u32 2, %s12
        %p209 = scmp.lt.s32.totalorder %s208, 7
        %s210 = scalar_select %p209, %s208, 7
        %s211 = smul.addr %s210, 2
        %s212 = smul.addr %s211, 8
        %s213 = scalar_lea.vmem %s0, %s212
        %s214 = smul.u32 2, %s12
      $region36: #{tpu_custom_call.1} parent=31 // pred_fallthru
        _
      // Predicated region
      $region37: #{tpu_custom_call.1} parent=31 // pred_check
        %p215 = pneg %p58
      $region38: #{tpu_custom_call.1} parent=31 // pred_check_branch
        %217 = sbr.rel (%p215) target = $region40
      $region39: #{tpu_custom_call.1} parent=31 // pred_region
        %s218 = smul.u32 2, %s12
        %p219 = scmp.lt.s32.totalorder %s218, 7
        %s220 = scalar_select %p219, %s218, 7
        %s221 = smul.addr %s220, 2
        %s222 = smul.addr %s221, 8
        %s223 = scalar_lea.vmem %s1, %s222
        %s224 = smul.u32 2, %s12
      $region40: #{tpu_custom_call.1} parent=31 // pred_fallthru
        _
    $region32: #{tpu_custom_call.1} parent=5 // pred_fallthru
      _
    %p225 = scmp.le.s32.totalorder 1, %s12
    %p226 = scmp.lt.s32.totalorder %s12, 5
    %p227 = pnand %p225, %p226
    %p228 = pneg %p227
    // Predicated region
    $region41: #{tpu_custom_call.1} parent=5 // pred_check
      _
    $region42: #{tpu_custom_call.1} parent=5 // pred_check_branch
      %230 = sbr.rel (%p227) target = $region44
    $region43: #{tpu_custom_call.1} parent=5 // pred_region
      %s231 = ssub.s32 %s12, 1
      %s232 = smul.u32 2, %s17
      %p233 = scmp.lt.s32.totalorder %s232, 7
      %s234 = scalar_select %p233, %s232, 7
      %s235 = smul.addr %s234, 2
      %s236 = smul.addr %s235, 8
      %s237 = scalar_lea.vmem %s0, %s236
      %p238 = pneg %p38
      %p239 = pneg %p35
      %s240 = smul.u32 2, %s17
      %p241 = scmp.lt.s32.totalorder %s240, 7
      %s242 = scalar_select %p241, %s240, 7
      %s243 = smul.addr %s242, 2
      %s244 = smul.addr %s243, 8
      %s245 = scalar_lea.vmem %s1, %s244
      %p246 = pneg %p64
      %p247 = pneg %p61
      %p248 = pneg %p85
      %p249 = pneg %p82
      %p250 = pneg %p106
      %p251 = pneg %p103
      %p252 = pneg %p127
      %p253 = pneg %p124
      %p254 = pneg %p148
      %p255 = pneg %p145
      %p256 = pneg %p174
      %p257 = pneg %p171
      %s258 = smul.u32 2, %s17
      %p259 = scmp.lt.s32.totalorder %s258, 7
      %s260 = scalar_select %p259, %s258, 7
      %s261 = smul.addr %s260, 8
      %s262 = scalar_lea.vmem %s6, %s261
      %s263 = smul.u32 2, %s17
      %p264 = scmp.lt.s32.totalorder %s263, 7
      %s265 = scalar_select %p264, %s263, 7
      %s266 = smul.addr %s265, 2
      %s267 = smul.addr %s266, 8
      %s268 = scalar_lea.vmem %s0, %s267
      %s269 = smul.u32 2, %s17
      %s270 = smul.u32 2, %s17
      %p271 = scmp.lt.s32.totalorder %s270, 7
      %s272 = scalar_select %p271, %s270, 7
      %s273 = smul.addr %s272, 2
      %s274 = smul.addr %s273, 8
      %s275 = scalar_lea.vmem %s1, %s274
      %s276 = smul.u32 2, %s17
      %s277 = smul.u32 2, %s17
      %p278 = scmp.lt.s32.totalorder %s277, 7
      %s279 = scalar_select %p278, %s277, 7
      %s280 = smul.addr %s279, 8
      %s281 = scalar_lea.vmem %s6, %s280
      %s282 = smul.u32 2, %s17
      %v283 = vld [vmem:[%s268] sm:$0xff]
      %v284 = vld [vmem:[%s268 + $0x8] sm:$0xff]
      %v285 = vld [vmem:[%s268 + $0x10] sm:$0xff]
      %v286 = vld [vmem:[%s268 + $0x18] sm:$0xff]
      %v287 = vld [vmem:[%s275] sm:$0xff]
      %v288 = vld [vmem:[%s275 + $0x8] sm:$0xff]
      %v289 = vld [vmem:[%s275 + $0x10] sm:$0xff]
      %v290 = vld [vmem:[%s275 + $0x18] sm:$0xff]
      %v291 = vld [vmem:[%s2] sm:$0xff]
      %v292 = vld [vmem:[%s2 + $0x8] sm:$0xff]
      %v293 = vld [vmem:[%s2 + $0x10] sm:$0xff]
      %v294 = vld [vmem:[%s2 + $0x18] sm:$0xff]
      %v295 = vld [vmem:[%s2 + $0x20] sm:$0xff]
      %v296 = vld [vmem:[%s2 + $0x28] sm:$0xff]
      %v297 = vld [vmem:[%s2 + $0x30] sm:$0xff]
      %v298 = vld [vmem:[%s2 + $0x38] sm:$0xff]
      %v299 = vld [vmem:[%s2 + $0x40] sm:$0xff]
      %v300 = vld [vmem:[%s2 + $0x48] sm:$0xff]
      %v301 = vld [vmem:[%s2 + $0x50] sm:$0xff]
      %v302 = vld [vmem:[%s2 + $0x58] sm:$0xff]
      %v303 = vld [vmem:[%s2 + $0x60] sm:$0xff]
      %v304 = vld [vmem:[%s2 + $0x68] sm:$0xff]
      %v305 = vld [vmem:[%s2 + $0x70] sm:$0xff]
      %v306 = vld [vmem:[%s2 + $0x78] sm:$0xff]
      %v307 = vld [vmem:[%s2 + $0x80] sm:$0xff]
      %v308 = vld [vmem:[%s2 + $0x88] sm:$0xff]
      %v309 = vld [vmem:[%s2 + $0x90] sm:$0xff]
      %v310 = vld [vmem:[%s2 + $0x98] sm:$0xff]
      %v311 = vld [vmem:[%s2 + $0xa0] sm:$0xff]
      %v312 = vld [vmem:[%s2 + $0xa8] sm:$0xff]
      %v313 = vld [vmem:[%s2 + $0xb0] sm:$0xff]
      %v314 = vld [vmem:[%s2 + $0xb8] sm:$0xff]
      %v315 = vld [vmem:[%s2 + $0xc0] sm:$0xff]
      %v316 = vld [vmem:[%s2 + $0xc8] sm:$0xff]
      %v317 = vld [vmem:[%s2 + $0xd0] sm:$0xff]
      %v318 = vld [vmem:[%s2 + $0xd8] sm:$0xff]
      %v319 = vld [vmem:[%s2 + $0xe0] sm:$0xff]
      %v320 = vld [vmem:[%s2 + $0xe8] sm:$0xff]
      %v321 = vld [vmem:[%s2 + $0xf0] sm:$0xff]
      %v322 = vld [vmem:[%s2 + $0xf8] sm:$0xff]
      %v323 = vld [vmem:[%s3] sm:$0x1]
      %v325 = vlaneseq
      %v326 = vshrl.u32 %v325, 7
      %v327 = vsub.s32 0, %v326
      %v328 = vrot.slane %v323, %v327
      %330 = vmatprep.subr.mxu0 0.0
      %331 = vmatpush1.msra.mxu0 %v291
      %332 = vmatprep.subr.mxu0 0.0
      %333 = vmatpush1.msra.mxu0 %v292
      %334 = vmatprep.subr.mxu0 0.0
      %335 = vmatpush1.msra.mxu0 %v293
      %336 = vmatprep.subr.mxu0 0.0
      %337 = vmatpush1.msra.mxu0 %v294
      %338 = vmatprep.subr.mxu0 0.0
      %339 = vmatpush1.msra.mxu0 %v295
      %340 = vmatprep.subr.mxu0 0.0
      %341 = vmatpush1.msra.mxu0 %v296
      %342 = vmatprep.subr.mxu0 0.0
      %343 = vmatpush1.msra.mxu0 %v297
      %344 = vmatprep.subr.mxu0 0.0
      %345 = vmatpush1.msra.mxu0 %v298
      %346 = vmatprep.subr.mxu0 0.0
      %347 = vmatpush1.msra.mxu0 %v299
      %348 = vmatprep.subr.mxu0 0.0
      %349 = vmatpush1.msra.mxu0 %v300
      %350 = vmatprep.subr.mxu0 0.0
      %351 = vmatpush1.msra.mxu0 %v301
      %352 = vmatprep.subr.mxu0 0.0
      %353 = vmatpush1.msra.mxu0 %v302
      %354 = vmatprep.subr.mxu0 0.0
      %355 = vmatpush1.msra.mxu0 %v303
      %356 = vmatprep.subr.mxu0 0.0
      %357 = vmatpush1.msra.mxu0 %v304
      %358 = vmatprep.subr.mxu0 0.0
      %359 = vmatpush1.msra.mxu0 %v305
      %360 = vmatprep.subr.mxu0 0.0
      %361 = vmatpush1.msra.mxu0 %v306
      %362 = vmatprep.subr.mxu0 0.0
      %363 = vmatpush1.msra.mxu0 %v307
      %364 = vmatprep.subr.mxu0 0.0
      %365 = vmatpush1.msra.mxu0 %v308
      %366 = vmatprep.subr.mxu0 0.0
      %367 = vmatpush1.msra.mxu0 %v309
      %368 = vmatprep.subr.mxu0 0.0
      %369 = vmatpush1.msra.mxu0 %v310
      %370 = vmatprep.subr.mxu0 0.0
      %371 = vmatpush1.msra.mxu0 %v311
      %372 = vmatprep.subr.mxu0 0.0
      %373 = vmatpush1.msra.mxu0 %v312
      %374 = vmatprep.subr.mxu0 0.0
      %375 = vmatpush1.msra.mxu0 %v313
      %376 = vmatprep.subr.mxu0 0.0
      %377 = vmatpush1.msra.mxu0 %v314
      %378 = vmatprep.subr.mxu0 0.0
      %379 = vmatpush1.msra.mxu0 %v315
      %380 = vmatprep.subr.mxu0 0.0
      %381 = vmatpush1.msra.mxu0 %v316
      %382 = vmatprep.subr.mxu0 0.0
      %383 = vmatpush1.msra.mxu0 %v317
      %384 = vmatprep.subr.mxu0 0.0
      %385 = vmatpush1.msra.mxu0 %v318
      %386 = vmatprep.subr.mxu0 0.0
      %387 = vmatpush1.msra.mxu0 %v319
      %388 = vmatprep.subr.mxu0 0.0
      %389 = vmatpush1.msra.mxu0 %v320
      %390 = vmatprep.subr.mxu0 0.0
      %391 = vmatpush1.msra.mxu0 %v321
      %392 = vmatprep.subr.mxu0 0.0
      %393 = vmatpush1.msra.mxu0 %v322
      %394 = vmatprep.mubr.f32.mxu0 %v284
      %395 = vmatmul.mubr.f32.gmra.mrb[0].mxu0 %v283
      %v396 = vpop.f32.mrb[0].mxu0
      %v397 = vadd.f32 %v328, %v396
      %v398 = vpop.f32.mrb[0].mxu0
      %399 = vmatprep.mubr.f32.mxu0 %v286
      %400 = vmatmul.mubr.f32.gmra.mrb[0].mxu0 %v285
      %v401 = vpop.f32.mrb[0].mxu0
      %v402 = vadd.f32 %v328, %v401
      %v403 = vpop.f32.mrb[0].mxu0
      %404 = vmatprep.mubr.f32.mxu0 %v288
      %405 = vmatmul.mubr.f32.gmra.mrb[0].mxu0 %v287
      %v406 = vpop.f32.mrb[0].mxu0
      %v407 = vadd.f32 %v328, %v406
      %v408 = vpop.f32.mrb[0].mxu0
      %409 = vmatprep.mubr.f32.mxu0 %v290
      %410 = vmatmul.mubr.f32.gmra.mrb[0].mxu0 %v289
      %v411 = vpop.f32.mrb[0].mxu0
      %v412 = vadd.f32 %v328, %v411
      %v413 = vpop.f32.mrb[0].mxu0
      %414 = vdwg.mxu0
      %v415 = vmax.f32 %v397, 0.0
      %v416 = vmax.f32 %v402, 0.0
      %v417 = vmax.f32 %v407, 0.0
      %v418 = vmax.f32 %v412, 0.0
      %v419 = vld [vmem:[%s4] sm:$0xff]
      %v420 = vld [vmem:[%s4 + $0x8] sm:$0xff]
      %v421 = vld [vmem:[%s4 + $0x10] sm:$0xff]
      %v422 = vld [vmem:[%s4 + $0x18] sm:$0xff]
      %v423 = vld [vmem:[%s5] sm:$0x1]
      %v425 = vlaneseq
      %v426 = vshrl.u32 %v425, 7
      %v427 = vsub.s32 0, %v426
      %v428 = vrot.slane %v423, %v427
      %vm430 = vcmask 261120
      %v432 = vsel %vm430, %v415, 0
      %v435 = vsel %vm430, %v416, 0
      %v438 = vsel %vm430, %v417, 0
      %v441 = vsel %vm430, %v418, 0
      %443 = vmatprep.subr.mxu0 0.0
      %444 = vmatpush1.msra.mxu0 %v419
      %445 = vmatprep.subr.mxu0 0.0
      %446 = vmatpush1.msra.mxu0 %v420
      %447 = vmatprep.subr.mxu0 0.0
      %448 = vmatpush1.msra.mxu0 %v421
      %449 = vmatprep.subr.mxu0 0.0
      %450 = vmatpush1.msra.mxu0 %v422
      %451 = vmatprep.subr.mxu0 0.0
      %452 = vmatpush1.msra.mxu0 0.0
      %453 = vmatprep.subr.mxu0 0.0
      %454 = vmatpush1.msra.mxu0 0.0
      %455 = vmatprep.subr.mxu0 0.0
      %456 = vmatpush1.msra.mxu0 0.0
      %457 = vmatprep.subr.mxu0 0.0
      %458 = vmatpush1.msra.mxu0 0.0
      %459 = vmatprep.subr.mxu0 0.0
      %460 = vmatpush1.msra.mxu0 0.0
      %461 = vmatprep.subr.mxu0 0.0
      %462 = vmatpush1.msra.mxu0 0.0
      %463 = vmatprep.subr.mxu0 0.0
      %464 = vmatpush1.msra.mxu0 0.0
      %465 = vmatprep.subr.mxu0 0.0
      %466 = vmatpush1.msra.mxu0 0.0
      %467 = vmatprep.subr.mxu0 0.0
      %468 = vmatpush1.msra.mxu0 0.0
      %469 = vmatprep.subr.mxu0 0.0
      %470 = vmatpush1.msra.mxu0 0.0
      %471 = vmatprep.subr.mxu0 0.0
      %472 = vmatpush1.msra.mxu0 0.0
      %473 = vmatprep.subr.mxu0 0.0
      %474 = vmatpush1.msra.mxu0 0.0
      %475 = vmatprep.subr.mxu0 0.0
      %476 = vmatpush1.msra.mxu0 0.0
      %477 = vmatprep.subr.mxu0 0.0
      %478 = vmatpush1.msra.mxu0 0.0
      %479 = vmatprep.subr.mxu0 0.0
      %480 = vmatpush1.msra.mxu0 0.0
      %481 = vmatprep.subr.mxu0 0.0
      %482 = vmatpush1.msra.mxu0 0.0
      %483 = vmatprep.subr.mxu0 0.0
      %484 = vmatpush1.msra.mxu0 0.0
      %485 = vmatprep.subr.mxu0 0.0
      %486 = vmatpush1.msra.mxu0 0.0
      %487 = vmatprep.subr.mxu0 0.0
      %488 = vmatpush1.msra.mxu0 0.0
      %489 = vmatprep.subr.mxu0 0.0
      %490 = vmatpush1.msra.mxu0 0.0
      %491 = vmatprep.subr.mxu0 0.0
      %492 = vmatpush1.msra.mxu0 0.0
      %493 = vmatprep.subr.mxu0 0.0
      %494 = vmatpush1.msra.mxu0 0.0
      %495 = vmatprep.subr.mxu0 0.0
      %496 = vmatpush1.msra.mxu0 0.0
      %497 = vmatprep.subr.mxu0 0.0
      %498 = vmatpush1.msra.mxu0 0.0
      %499 = vmatprep.subr.mxu0 0.0
      %500 = vmatpush1.msra.mxu0 0.0
      %501 = vmatprep.subr.mxu0 0.0
      %502 = vmatpush1.msra.mxu0 0.0
      %503 = vmatprep.subr.mxu0 0.0
      %504 = vmatpush1.msra.mxu0 0.0
      %505 = vmatprep.subr.mxu0 0.0
      %506 = vmatpush1.msra.mxu0 0.0
      %507 = vmatprep.mubr.f32.mxu0 0.0
      %508 = vmatmul.mubr.f32.gmra.mrb[0].mxu0 %v432
      %v509 = vpop.f32.mrb[0].mxu0
      %v510 = vadd.f32 %v428, %v509
      %v511 = vpop.f32.mrb[0].mxu0
      %512 = vmatprep.mubr.f32.mxu0 0.0
      %513 = vmatmul.mubr.f32.gmra.mrb[0].mxu0 %v435
      %v514 = vpop.f32.mrb[0].mxu0
      %v515 = vadd.f32 %v428, %v514
      %v516 = vpop.f32.mrb[0].mxu0
      %517 = vmatprep.mubr.f32.mxu0 0.0
      %518 = vmatmul.mubr.f32.gmra.mrb[0].mxu0 %v438
      %v519 = vpop.f32.mrb[0].mxu0
      %v520 = vadd.f32 %v428, %v519
      %v521 = vpop.f32.mrb[0].mxu0
      %522 = vmatprep.mubr.f32.mxu0 0.0
      %523 = vmatmul.mubr.f32.gmra.mrb[0].mxu0 %v441
      %v524 = vpop.f32.mrb[0].mxu0
      %v525 = vadd.f32 %v428, %v524
      %v526 = vpop.f32.mrb[0].mxu0
      %527 = vdwg.mxu0
      %530 = vrot.lane.b32.xlu0 %v520, 16
      %v531 = vpop.permute.xlu0 %530
      %532 = vrot.lane.b32.xlu0 %v525, 16
      %v533 = vpop.permute.xlu0 %532
      %vm536 = vcmask 130048
      %v537 = vsel %vm536, %v510, %v531
      %v538 = vsel %vm536, %v515, %v533
      %539 = vst.msk [vmem:[%s281] sm:$0xff] %vm430, %v537
      %540 = vst.msk [vmem:[%s281 + $0x8] sm:$0xff] %vm430, %v538
      %s541 = smul.u32 2, %s17
      %p542 = scmp.lt.s32.totalorder %s541, 7
      %s543 = scalar_select %p542, %s541, 7
      %s544 = smul.addr %s543, 8
      %s545 = scalar_lea.vmem %s6, %s544
      // Predicated region
      $region45: #{tpu_custom_call.1} parent=43 // pred_check
        %p546 = pneg %p171
      $region46: #{tpu_custom_call.1} parent=43 // pred_check_branch
        %548 = sbr.rel (%p546) target = $region48
      $region47: #{tpu_custom_call.1} parent=43 // pred_region
        %s549 = smul.u32 2, %s17
      $region48: #{tpu_custom_call.1} parent=43 // pred_fallthru
        _
    $region44: #{tpu_custom_call.1} parent=5 // pred_fallthru
      _
    %p550 = scmp.le.s32.totalorder 2, %s12
    // Predicated region
    $region49: #{tpu_custom_call.1} parent=5 // pred_check
      %p551 = pneg %p550
    $region50: #{tpu_custom_call.1} parent=5 // pred_check_branch
      %553 = sbr.rel (%p551) target = $region52
    $region51: #{tpu_custom_call.1} parent=5 // pred_region
      %s554 = ssub.s32 %s12, 2
      // Predicated region
      $region53: #{tpu_custom_call.1} parent=51 // pred_check
        %p555 = pneg %p177
      $region54: #{tpu_custom_call.1} parent=51 // pred_check_branch
        %557 = sbr.rel (%p555) target = $region56
      $region55: #{tpu_custom_call.1} parent=51 // pred_region
        %s558 = smul.u32 2, %s18
        %p559 = scmp.lt.s32.totalorder %s558, 7
        %s560 = scalar_select %p559, %s558, 7
        %s561 = smul.addr %s560, 8
        %s562 = scalar_lea.vmem %s6, %s561
      $region56: #{tpu_custom_call.1} parent=51 // pred_fallthru
        _
    $region52: #{tpu_custom_call.1} parent=5 // pred_fallthru
      _
  $region6: #{tpu_custom_call.1} parent=0 // loop_footer
    %s16 = sadd.s32 1, %s12
  $region7: #{tpu_custom_call.1} parent=0 // loop_footer_branch
    %11 = sbr.rel target = $region3
  $region8: #{tpu_custom_call.1} parent=0 // loop_exit
    _

</llo_original>
